<compile_context>
chip_gen: v6e
topology: v6e:2x2x1
jax: 0.10.0
libtpu: 0.0.40
codegen_flags: <defaults>
</compile_context>

<pallas_src>
import functools

import jax
import jax.numpy as jnp
from jax.experimental import pallas as pl
from jax.experimental.pallas import tpu as pltpu


_LANE = 128


def _round_up(x: int, m: int) -> int:
    return ((x + m - 1) // m) * m


def _is_bf16(dt) -> bool:
    return jnp.dtype(dt) == jnp.dtype(jnp.bfloat16)


def _largest_tile(dim: int, cap: int, align: int = _LANE) -> int:
    """Largest multiple of `align` that divides `dim` (a multiple of align) and <= cap."""
    best = align
    t = align
    while t <= min(cap, dim):
        if dim % t == 0:
            best = t
        t += align
    return best


def _fit(x, rows: int, cols: int):
    """Zero-pad and/or slice a 2-D array to exactly (rows, cols)."""
    r, c = x.shape
    if r < rows or c < cols:
        x = jnp.pad(x, ((0, max(0, rows - r)), (0, max(0, cols - c))))
    if x.shape != (rows, cols):
        x = x[:rows, :cols]
    return x


def _pick_m_tile(M: int, mxu_dtype):
    """M tile aligned for the dtype's sublane packing; tries to give >=2 tiles (v7x megacore)."""
    bf16 = _is_bf16(mxu_dtype)
    m_align = 16 if bf16 else 8           # bf16 packs 2 rows / sublane
    tm_cap = 512 if bf16 else 256
    tm = min(tm_cap, _round_up(M, m_align))
    Mp = _round_up(M, tm)
    # v7x has 2 TensorCores: prefer >=2 blocks on the "parallel" M axis.
    if Mp // tm == 1 and Mp % (2 * m_align) == 0:
        tm = Mp // 2
    return tm, Mp


def _vmem_limit(need_bytes: int) -> int:
    # need + headroom, clamped to stay within every generation's scoped/physical VMEM.
    return int(min(max(need_bytes + (8 << 20), 16 << 20), 56 << 20))


# ----------------------- general tiled Linear (+ReLU) ------------------------

def _linear_kernel(x_ref, w_ref, b_ref, o_ref, acc_ref, *, apply_relu):
    """One (tm, tn) output tile; accumulates over the K grid axis.  Operands arrive
    already in the MXU dtype (no in-kernel casts of whole tiles)."""
    k = pl.program_id(2)

    @pl.when(k == 0)
    def _():
        acc_ref[...] = jnp.zeros_like(acc_ref)

    acc_ref[...] += jnp.dot(
        x_ref[...],                         # [tm, tk]  (mxu dtype)
        w_ref[...],                         # [tk, tn]  (pre-transposed, mxu dtype)
        preferred_element_type=jnp.float32,
    )

    @pl.when(k == pl.num_programs(2) - 1)
    def _():
        y = acc_ref[...] + b_ref[...]       # f32 epilogue (v5e-safe)
        if apply_relu:
            y = jnp.maximum(y, 0.0)
        o_ref[...] = y.astype(o_ref.dtype)


def pallas_linear(x, wT_pad, b_pad, *, M, apply_relu=False, out_dtype=jnp.float32):
    """y = x @ wT_pad + b, tiled.  `wT_pad` is [Kp, Np] (already transposed, padded,
    in the MXU dtype); `b_pad` is [1, Np] f32.  Returns the PADDED [Mp, Np] output so
    chained layers never slice / re-pad activations."""
    mxu_dtype = wT_pad.dtype
    Kp, Np = wT_pad.shape
    isz = jnp.dtype(mxu_dtype).itemsize
    bf16 = _is_bf16(mxu_dtype)

    tn_cap, tk_cap = (512, 1024) if bf16 else (256, 512)
    tm, Mp = _pick_m_tile(M, mxu_dtype)
    tn = _largest_tile(Np, tn_cap)
    tk = _largest_tile(Kp, tk_cap)

    x_p = _fit(x.astype(mxu_dtype), Mp, Kp)
    grid = (Mp // tm, Np // tn, Kp // tk)

    out_isz = jnp.dtype(out_dtype).itemsize
    need = (2 * (tm * tk + tk * tn) * isz      # double-buffered inputs
            + 2 * tm * tn * out_isz            # double-buffered output
            + tm * tn * 4                      # f32 accumulator
            + 2 * tn * 4)                      # bias
    cost = pl.CostEstimate(
        flops=2 * Mp * Np * Kp,
        transcendentals=0,
        bytes_accessed=isz * (Mp * Kp + Kp * Np) + out_isz * Mp * Np + 4 * Np,
    )
    out = pl.pallas_call(
        functools.partial(_linear_kernel, apply_relu=apply_relu),
        out_shape=jax.ShapeDtypeStruct((Mp, Np), out_dtype),
        grid_spec=pltpu.PrefetchScalarGridSpec(
            num_scalar_prefetch=0,
            grid=grid,
            in_specs=[
                pl.BlockSpec((tm, tk), lambda i, j, k: (i, k)),
                pl.BlockSpec((tk, tn), lambda i, j, k: (k, j)),
                pl.BlockSpec((1, tn), lambda i, j, k: (0, j)),
            ],
            out_specs=pl.BlockSpec((tm, tn), lambda i, j, k: (i, j)),
            scratch_shapes=[pltpu.VMEM((tm, tn), jnp.float32)],
        ),
        compiler_params=pltpu.CompilerParams(
            dimension_semantics=("parallel", "parallel", "arbitrary"),
            vmem_limit_bytes=_vmem_limit(need)),
        cost_estimate=cost,
    )(x_p, wT_pad, b_pad)
    return out                                  # padded [Mp, Np]


# ------------------- fused (Linear(C,C) + ReLU) * L stack ---------------------

def _hidden_stack_kernel(x_ref, w_ref, b_ref, o_ref, act_ref, *, weights_resident):
    """Grid = (M tiles, L layers).  Activation stays in VMEM scratch across layers.
    With weights_resident=True the whole [L, Cp, Cp] stack is VMEM-resident and
    indexed with the layer id (no per-(M-tile, layer) weight DMA)."""
    l = pl.program_id(1)

    @pl.when(l == 0)
    def _():
        act_ref[...] = x_ref[...]

    if weights_resident:
        w = w_ref[l]                        # [Cp, Cp]  dynamic layer slice of resident stack
        b = b_ref[l]                        # [1, Cp]
    else:
        w = w_ref[0]                        # per-layer streamed block
        b = b_ref[0]

    y = jnp.dot(act_ref[...], w, preferred_element_type=jnp.float32)
    y = jnp.maximum(y + b, 0.0)             # f32 bias + ReLU epilogue
    act_ref[...] = y.astype(act_ref.dtype)

    @pl.when(l == pl.num_programs(1) - 1)
    def _():
        o_ref[...] = y.astype(o_ref.dtype)


def pallas_hidden_stack(x, wT_stack, b_stack, *, M, weights_resident):
    """Fuses L equal-shaped hidden (Linear+ReLU) layers into one pallas_call."""
    mxu_dtype = wT_stack.dtype
    L, Cp, _ = wT_stack.shape
    isz = jnp.dtype(mxu_dtype).itemsize

    tm, Mp = _pick_m_tile(M, mxu_dtype)
    x_p = _fit(x.astype(mxu_dtype), Mp, Cp)

    if weights_resident:
        w_spec = pl.BlockSpec((L, Cp, Cp), lambda i, l: (0, 0, 0))   # resident across grid
        b_spec = pl.BlockSpec((L, 1, Cp), lambda i, l: (0, 0, 0))
        w_bytes = L * Cp * Cp * isz + L * Cp * 4
    else:
        w_spec = pl.BlockSpec((1, Cp, Cp), lambda i, l: (l, 0, 0))   # streamed per layer
        b_spec = pl.BlockSpec((1, 1, Cp), lambda i, l: (l, 0, 0))
        w_bytes = 2 * (Cp * Cp * isz + Cp * 4)

    need = (w_bytes
            + 2 * tm * Cp * isz              # double-buffered x
            + 2 * tm * Cp * isz              # double-buffered out
            + tm * Cp * isz)                 # resident activation scratch
    cost = pl.CostEstimate(
        flops=2 * Mp * Cp * Cp * L,
        transcendentals=0,
        bytes_accessed=isz * (2 * Mp * Cp + L * Cp * Cp) + 4 * L * Cp,
    )
    out = pl.pallas_call(
        functools.partial(_hidden_stack_kernel, weights_resident=weights_resident),
        out_shape=jax.ShapeDtypeStruct((Mp, Cp), mxu_dtype),
        grid_spec=pltpu.PrefetchScalarGridSpec(
            num_scalar_prefetch=0,
            grid=(Mp // tm, L),
            in_specs=[
                pl.BlockSpec((tm, Cp), lambda i, l: (i, 0)),
                w_spec,
                b_spec,
            ],
            out_specs=pl.BlockSpec((tm, Cp), lambda i, l: (i, 0)),
            scratch_shapes=[pltpu.VMEM((tm, Cp), mxu_dtype)],
        ),
        compiler_params=pltpu.CompilerParams(
            dimension_semantics=("parallel", "arbitrary"),
            vmem_limit_bytes=_vmem_limit(need)),
        cost_estimate=cost,
    )(x_p, wT_stack, b_stack)
    return out                                # padded [Mp, Cp], mxu_dtype


# ------------------------------- FC module ------------------------------------

def init_fc_params(key, in_channels: int, out_channels: int, layer: int = 1):
    """Deterministic init mimicking the shapes of the PyTorch FC module."""
    params = {"hidden": [], "fc1": None}
    bound = 1.0 / jnp.sqrt(in_channels)
    for _ in range(layer - 1):
        key, kw, kb = jax.random.split(key, 3)
        w = jax.random.uniform(kw, (in_channels, in_channels),
                               minval=-bound, maxval=bound, dtype=jnp.float32)
        b = jax.random.uniform(kb, (in_channels,),
                               minval=-bound, maxval=bound, dtype=jnp.float32)
        params["hidden"].append((w, b))
    key, kw, kb = jax.random.split(key, 3)
    w1 = jax.random.uniform(kw, (out_channels, in_channels),
                            minval=-bound, maxval=bound, dtype=jnp.float32)
    b1 = jax.random.uniform(kb, (out_channels,),
                            minval=-bound, maxval=bound, dtype=jnp.float32)
    params["fc1"] = (w1, b1)
    return params


def prepare_fc_params(params, *, mxu_dtype=jnp.bfloat16):
    """One-time weight preprocessing: transpose to [K, N], zero-pad to lane multiples,
    stack hidden layers, and cast MXU operands to `mxu_dtype`.  Biases stay f32."""
    mxu_dtype = jnp.dtype(mxu_dtype)
    prep = {"mxu_dtype": mxu_dtype, "hidden": None}
    hidden = params["hidden"]
    if hidden:
        C = hidden[0][0].shape[0]
        Cp = _round_up(C, _LANE)
        wT = jnp.stack([jnp.pad(w.astype(jnp.float32).T, ((0, Cp - C), (0, Cp - C)))
                        for (w, _) in hidden]).astype(mxu_dtype)            # [L,Cp,Cp]
        bb = jnp.stack([jnp.pad(b.astype(jnp.float32).reshape(1, C), ((0, 0), (0, Cp - C)))
                        for (_, b) in hidden])                              # [L,1,Cp] f32
        prep["hidden"] = {"wT": wT, "b": bb, "C": C, "Cp": Cp, "L": len(hidden)}
    w1, b1 = params["fc1"]
    N, K = w1.shape
    Kp, Np = _round_up(K, _LANE), _round_up(N, _LANE)
    prep["fc1"] = {
        "wT": jnp.pad(w1.astype(jnp.float32).T, ((0, Kp - K), (0, Np - N))).astype(mxu_dtype),
        "b": jnp.pad(b1.astype(jnp.float32).reshape(1, N), ((0, 0), (0, Np - N))),
        "K": K, "N": N,
    }
    return prep


def fc_forward(prepared, x):
    """Forward pass of FC: hidden (Linear+ReLU)* then fc1 Linear (prepared params)."""
    mxu_dtype = prepared["mxu_dtype"]
    M = x.shape[0]
    x = x.astype(mxu_dtype)

    h = prepared["hidden"]
    if h is not None:
        isz = jnp.dtype(mxu_dtype).itemsize
        Cp, L = h["Cp"], h["L"]
        tm_est, _ = _pick_m_tile(M, mxu_dtype)
        stream_bytes = 5 * tm_est * Cp * isz              # x/out double-buffers + act scratch
        resident_bytes = L * Cp * Cp * isz + L * Cp * 4
        budget = 26 << 20                                 # conservative vs v7x scoped VMEM
        if resident_bytes + stream_bytes <= budget:
            # Best path: whole weight stack VMEM-resident, activation resident per M tile.
            x = pallas_hidden_stack(x, h["wT"], h["b"], M=M, weights_resident=True)
        elif 2 * Cp * Cp * isz + stream_bytes <= budget:
            # Fused layer loop with per-layer streamed (double-buffered) weights.
            x = pallas_hidden_stack(x, h["wT"], h["b"], M=M, weights_resident=False)
        else:
            # Very wide layers: per-layer tiled linears; activations stay padded &
            # in mxu_dtype between layers (single slice at the very end).
            for l in range(L):
                x = pallas_linear(x, h["wT"][l], h["b"][l], M=M,
                                  apply_relu=True, out_dtype=mxu_dtype)

    f = prepared["fc1"]
    out = pallas_linear(x, f["wT"], f["b"], M=M, apply_relu=False, out_dtype=jnp.float32)
    return out[:M, :f["N"]]


if __name__ == "__main__":
    key = jax.random.PRNGKey(0)
    batch, in_channels, out_channels, n_layer = 8, 32, 16, 3

    key, kx, kp = jax.random.split(key, 3)
    x = jax.random.normal(kx, (batch, in_channels), dtype=jnp.float32)
    params = init_fc_params(kp, in_channels, out_channels, layer=n_layer)

    # Plain-JAX reference (same math as the torch.nn.Linear chain).
    ref = x
    for (w, b) in params["hidden"]:
        ref = jnp.maximum(ref @ w.T + b, 0.0)
    w1, b1 = params["fc1"]
    ref = ref @ w1.T + b1

    # Default fast path: bf16 MXU operands (cast once in prepare), f32 accumulation.
    prep_bf16 = prepare_fc_params(params, mxu_dtype=jnp.bfloat16)
    out_bf16 = fc_forward(prep_bf16, x)
    jax.block_until_ready(out_bf16)
    assert out_bf16.shape == (batch, out_channels)
    assert jnp.allclose(out_bf16, ref, atol=3e-2, rtol=3e-2), \
        float(jnp.max(jnp.abs(out_bf16 - ref)))

    # Exactness check of the kernel structure with f32 MXU operands.
    prep_f32 = prepare_fc_params(params, mxu_dtype=jnp.float32)
    out_f32 = fc_forward(prep_f32, x)
    jax.block_until_ready(out_f32)
    assert jnp.allclose(out_f32, ref, atol=1e-5, rtol=1e-5), \
        float(jnp.max(jnp.abs(out_f32 - ref)))

    print("KERNEL_OK")
</pallas_src>

<mosaic_0001>
module attributes {stable_mosaic.version = 11 : i64} {
  func.func @_hidden_stack_kernel(%arg0: i32, %arg1: i32, %arg2: memref<16x128xbf16, #tpu.memory_space<vmem>>, %arg3: memref<2x128x128xbf16, #tpu.memory_space<vmem>>, %arg4: memref<2x1x128xf32, #tpu.memory_space<vmem>>, %arg5: memref<16x128xbf16, #tpu.memory_space<vmem>>, %arg6: memref<16x128xbf16, #tpu.memory_space<vmem>>) attributes {dimension_semantics = [#tpu.dimension_semantics<parallel>, #tpu.dimension_semantics<arbitrary>], iteration_bounds = array<i64: 1, 2>, scalar_prefetch = 0 : i64, scratch_operands = 1 : i64, tpu.core_type = #tpu.core_type<tc>, window_params = [{transform_indices = @transform_0, window_bounds = array<i64: 16, 128>}, {pipeline_mode = #tpu.pipeline_mode<synchronous>, transform_indices = @transform_1, window_bounds = array<i64: 2, 128, 128>}, {pipeline_mode = #tpu.pipeline_mode<synchronous>, transform_indices = @transform_2, window_bounds = array<i64: 2, 1, 128>}, {transform_indices = @transform_3, window_bounds = array<i64: 16, 128>}]} {
    %c0_i32 = arith.constant 0 : i32
    %0 = arith.cmpi eq, %arg1, %c0_i32 : i32
    %1 = arith.extui %0 : i1 to i32
    %c0_i32_0 = arith.constant 0 : i32
    %2 = arith.cmpi ne, %1, %c0_i32_0 : i32
    scf.if %2 {
      %c0_10 = arith.constant 0 : index
      %c0_11 = arith.constant 0 : index
      %20 = vector.load %arg2[%c0_10, %c0_11] : memref<16x128xbf16, #tpu.memory_space<vmem>>, vector<16x128xbf16>
      %c0_12 = arith.constant 0 : index
      %c0_13 = arith.constant 0 : index
      %21 = vector.load %arg6[%c0_12, %c0_13] : memref<16x128xbf16, #tpu.memory_space<vmem>>, vector<16x128xbf16>
      tpu.vector_store %arg6[%c0_12, %c0_13], %20 {strides = array<i32>} : memref<16x128xbf16, #tpu.memory_space<vmem>>, vector<16x128xbf16>,
    } else {
    }
    %3 = arith.index_cast %arg1 : i32 to index
    %c0 = arith.constant 0 : index
    %c0_1 = arith.constant 0 : index
    %4 = vector.load %arg3[%3, %c0, %c0_1] : memref<2x128x128xbf16, #tpu.memory_space<vmem>>, vector<1x128x128xbf16>
    %5 = vector.shape_cast %4 : vector<1x128x128xbf16> to vector<128x128xbf16>
    %6 = arith.index_cast %arg1 : i32 to index
    %c0_2 = arith.constant 0 : index
    %c0_3 = arith.constant 0 : index
    %7 = vector.load %arg4[%6, %c0_2, %c0_3] : memref<2x1x128xf32, #tpu.memory_space<vmem>>, vector<1x1x128xf32>
    %8 = vector.shape_cast %7 : vector<1x1x128xf32> to vector<1x128xf32>
    %c0_4 = arith.constant 0 : index
    %c0_5 = arith.constant 0 : index
    %9 = vector.load %arg6[%c0_4, %c0_5] : memref<16x128xbf16, #tpu.memory_space<vmem>>, vector<16x128xbf16>
    %cst = arith.constant dense<0.000000e+00> : vector<16x128xf32>
    %10 = tpu.matmul %9, %5, %cst {dimension_numbers = #tpu.dot_dimension_numbers<[1], [0], [0], [1], [0, 0, 1, 1], [], []>} : vector<16x128xbf16>, vector<128x128xbf16>, vector<16x128xf32> -> vector<16x128xf32>
    %11 = vector.broadcast %8 : vector<1x128xf32> to vector<16x128xf32>
    %12 = arith.addf %10, %11 : vector<16x128xf32>
    %cst_6 = arith.constant 0.000000e+00 : f32
    %13 = vector.broadcast %cst_6 : f32 to vector<16x128xf32>
    %14 = arith.maximumf %12, %13 : vector<16x128xf32>
    %15 = arith.truncf %14 : vector<16x128xf32> to vector<16x128xbf16>
    %c0_7 = arith.constant 0 : index
    %c0_8 = arith.constant 0 : index
    %16 = vector.load %arg6[%c0_7, %c0_8] : memref<16x128xbf16, #tpu.memory_space<vmem>>, vector<16x128xbf16>
    tpu.vector_store %arg6[%c0_7, %c0_8], %15 {strides = array<i32>} : memref<16x128xbf16, #tpu.memory_space<vmem>>, vector<16x128xbf16>,
    %c1_i32 = arith.constant 1 : i32
    %17 = arith.cmpi eq, %arg1, %c1_i32 : i32
    %18 = arith.extui %17 : i1 to i32
    %c0_i32_9 = arith.constant 0 : i32
    %19 = arith.cmpi ne, %18, %c0_i32_9 : i32
    scf.if %19 {
      %20 = arith.truncf %14 : vector<16x128xf32> to vector<16x128xbf16>
      %c0_10 = arith.constant 0 : index
      %c0_11 = arith.constant 0 : index
      %21 = vector.load %arg5[%c0_10, %c0_11] : memref<16x128xbf16, #tpu.memory_space<vmem>>, vector<16x128xbf16>
      tpu.vector_store %arg5[%c0_10, %c0_11], %20 {strides = array<i32>} : memref<16x128xbf16, #tpu.memory_space<vmem>>, vector<16x128xbf16>,
    } else {
    }
    return
  }
  func.func @transform_0(%arg0: i32, %arg1: i32) -> (i32, i32) {
    %c0_i32 = arith.constant 0 : i32
    %c0_i32_0 = arith.constant 0 : i32
    return %arg0, %c0_i32 : i32, i32
  }
  func.func @transform_1(%arg0: i32, %arg1: i32) -> (i32, i32, i32) {
    %c0_i32 = arith.constant 0 : i32
    %c0_i32_0 = arith.constant 0 : i32
    %c0_i32_1 = arith.constant 0 : i32
    %c0_i32_2 = arith.constant 0 : i32
    return %c0_i32, %c0_i32_0, %c0_i32_1 : i32, i32, i32
  }
  func.func @transform_2(%arg0: i32, %arg1: i32) -> (i32, i32, i32) {
    %c0_i32 = arith.constant 0 : i32
    %c0_i32_0 = arith.constant 0 : i32
    %c0_i32_1 = arith.constant 0 : i32
    %c0_i32_2 = arith.constant 0 : i32
    return %c0_i32, %c0_i32_0, %c0_i32_1 : i32, i32, i32
  }
  func.func @transform_3(%arg0: i32, %arg1: i32) -> (i32, i32) {
    %c0_i32 = arith.constant 0 : i32
    %c0_i32_0 = arith.constant 0 : i32
    return %arg0, %c0_i32 : i32, i32
  }
}

</mosaic_0001>

<llo_original>
// kernel: tpu_custom_call.1
$region0: #{tpu_custom_call.1}
  #allocation0 [shape = 'u32[]', space=smem, size = 0x4, offset = 0x4, fixed_abs, tag = 'smem constant byte address 0x4 - core index']
  #allocation1 [shape = 'u32[144,128]{1,0:T(1,128)}', space=vmem, size = 0x12000, scoped, tag = 'internal scratch']
  #allocation2 [shape = 'bf16[16,128]{1,0:T(8,128)(2,1)}', space=vmem, size = 0x1000, scoped, tag = 'scratch operand']
  %s0 = inlined_call_operand.hbm [shape: bf16[16,128], index: 0, kind: input, shape index: {}]
  %s1 = inlined_call_operand.hbm [shape: bf16[2,128,128], index: 1, kind: input, shape index: {}]
  %s2 = inlined_call_operand.vmem [shape: f32[2,1,128], index: 2, kind: input, shape index: {}]
  %s3 = inlined_call_operand.hbm [shape: bf16[16,128], index: 3, kind: output, shape index: {}]
  %s4 = sld [smem:[#allocation0]]
  $region61: #{tpu_custom_call.1} parent=0
    _
  %s6 = ssub.s32 1, %s4
  %s7 = scalar_select 0, %s6, %s4
  $region1: #{tpu_custom_call.1} parent=0
    #allocation3 [shape = 'u8[4096]{0}', space=vmem, size = 0x1000, scoped, tag = 'input window, operand 0, single buffered']
    #allocation4 [shape = 's32[2]{0}', space=sflag, size = 0x8, scoped, tag = 'scoped memory for tpu_custom_call.1']
    #allocation5 [shape = 's32[2]{0}', space=sflag, size = 0x8, scoped, tag = 'scoped memory for tpu_custom_call.1']
    #allocation6 [shape = 'u8[65536]{0}', space=vmem, size = 0x10000, scoped, tag = 'input window, operand 1, single buffered']
    #allocation7 [shape = 's32[1]{0}', space=sflag, size = 0x4, scoped, tag = 'scoped memory for tpu_custom_call.1']
    #allocation8 [shape = 'u8[4096]{0}', space=vmem, size = 0x1000, scoped, tag = 'output window, operand 0, single buffered']
    %8 = vsyncpa [#allocation4], 0
    %9 = vsyncpa [#allocation7], 0
    %10 = vsyncpa [#allocation5], 0
    loop: start=0, step=1, limit=4
    $region2: #{tpu_custom_call.1} parent=1 // loop_pre_header
      _
    $region3: #{tpu_custom_call.1} parent=1 // loop_header
      %s12 = sphi 0, %s16
      %p13 = scmp.ge.s32.totalorder %s12, 4
      %s19 = sphi 0, %s31
      %s20 = sphi 0, %s27
      %s21 = sphi 0, %s19
      %s22 = sphi 0, %s20
      %s23 = sphi 0, %s21
      %s24 = sphi 0, %s22
      %s34 = sphi 0, %s36
      %s37 = sphi 0, %s34
      %s38 = sphi 0, %s37
      %s54 = sphi 0, %s38
      %s58 = sphi 0, %s58
      %s60 = sphi 0, %s58
      %s61 = sphi 0, %s60
      %s75 = sphi 0, %s61
      %s79 = sphi 0, %s79
      %s81 = sphi 0, %s79
      %s82 = sphi 0, %s81
      %s96 = sphi 0, %s82
      %s102 = sphi 0, %s104
      %s105 = sphi 0, %s102
      %s106 = sphi 0, %s105
      %s122 = sphi 0, %s106
    $region4: #{tpu_custom_call.1} parent=1 // loop_header_branch
      %15 = sbr.rel (%p13) target = $region8
    $region5: #{tpu_custom_call.1} parent=1 // loop_body
      %s17 = ssub.s32 %s12, 1
      %s18 = ssub.s32 %s12, 2
      %s25 = sadd.s32 1, %s20
      %p26 = scmp.ge.s32.totalorder %s25, 2
      %s27 = scalar_select %p26, 0, %s25
      %s28 = sadd.s32 1, %s19
      %s29 = scalar_select %p26, %s28, %s19
      %p30 = scmp.ge.s32.totalorder %s29, 1
      %s31 = scalar_select %p30, 0, %s29
      %s32 = ssub.s32 %s19, %s31
      %p33 = scmp.eq.s32.totalorder %s32, 0
      %s35 = sadd.s32 %s34, 1
      %s36 = scalar_select %p33, %s34, %s35
      %p39 = pneg %p33
      %p40 = scmp.eq.s32.totalorder %s12, 1
      %p41 = por %p39, %p40
      %p42 = scmp.ne.s32.totalorder %s34, %s37
      %p43 = scmp.eq.s32.totalorder %s12, 0
      %p44 = por %p42, %p43
      %p45 = scmp.ne.s32.totalorder %s34, %s37
      %p46 = scmp.eq.s32.totalorder %s17, 1
      %p47 = por %p45, %p46
      %p48 = scmp.ne.s32.totalorder %s37, %s38
      %p49 = scmp.eq.s32.totalorder %s17, 0
      %p50 = por %p48, %p49
      %p51 = scmp.ne.s32.totalorder %s37, %s38
      %p52 = scmp.eq.s32.totalorder %s18, 1
      %p53 = por %p51, %p52
      %p55 = scmp.ne.s32.totalorder %s38, %s54
      %p56 = scmp.eq.s32.totalorder %s18, 0
      %p57 = por %p55, %p56
      %s59 = sadd.s32 %s58, 1
      %p62 = scmp.eq.s32.totalorder %s12, 1
      %p63 = scmp.ne.s32.totalorder %s58, %s60
      %p64 = scmp.eq.s32.totalorder %s12, 0
      %p65 = por %p63, %p64
      %p66 = scmp.ne.s32.totalorder %s58, %s60
      %p67 = scmp.eq.s32.totalorder %s17, 1
      %p68 = por %p66, %p67
      %p69 = scmp.ne.s32.totalorder %s60, %s61
      %p70 = scmp.eq.s32.totalorder %s17, 0
      %p71 = por %p69, %p70
      %p72 = scmp.ne.s32.totalorder %s60, %s61
      %p73 = scmp.eq.s32.totalorder %s18, 1
      %p74 = por %p72, %p73
      %p76 = scmp.ne.s32.totalorder %s61, %s75
      %p77 = scmp.eq.s32.totalorder %s18, 0
      %p78 = por %p76, %p77
      %s80 = sadd.s32 %s79, 1
      %p83 = scmp.eq.s32.totalorder %s12, 1
      %p84 = scmp.ne.s32.totalorder %s79, %s81
      %p85 = scmp.eq.s32.totalorder %s12, 0
      %p86 = por %p84, %p85
      %p87 = scmp.ne.s32.totalorder %s79, %s81
      %p88 = scmp.eq.s32.totalorder %s17, 1
      %p89 = por %p87, %p88
      %p90 = scmp.ne.s32.totalorder %s81, %s82
      %p91 = scmp.eq.s32.totalorder %s17, 0
      %p92 = por %p90, %p91
      %p93 = scmp.ne.s32.totalorder %s81, %s82
      %p94 = scmp.eq.s32.totalorder %s18, 1
      %p95 = por %p93, %p94
      %p97 = scmp.ne.s32.totalorder %s82, %s96
      %p98 = scmp.eq.s32.totalorder %s18, 0
      %p99 = por %p97, %p98
      %s100 = ssub.s32 %s19, %s31
      %p101 = scmp.eq.s32.totalorder %s100, 0
      %s103 = sadd.s32 %s102, 1
      %s104 = scalar_select %p101, %s102, %s103
      %p107 = pneg %p101
      %p108 = scmp.eq.s32.totalorder %s12, 1
      %p109 = por %p107, %p108
      %p110 = scmp.ne.s32.totalorder %s102, %s105
      %p111 = scmp.eq.s32.totalorder %s12, 0
      %p112 = por %p110, %p111
      %p113 = scmp.ne.s32.totalorder %s102, %s105
      %p114 = scmp.eq.s32.totalorder %s17, 1
      %p115 = por %p113, %p114
      %p116 = scmp.ne.s32.totalorder %s105, %s106
      %p117 = scmp.eq.s32.totalorder %s17, 0
      %p118 = por %p116, %p117
      %p119 = scmp.ne.s32.totalorder %s105, %s106
      %p120 = scmp.eq.s32.totalorder %s18, 1
      %p121 = por %p119, %p120
      %p123 = scmp.ne.s32.totalorder %s106, %s122
      %p124 = scmp.eq.s32.totalorder %s18, 0
      %p125 = por %p123, %p124
      %p126 = scmp.le.s32.totalorder 1, %s12
      %p127 = scmp.lt.s32.totalorder %s12, 3
      %p128 = pnand %p126, %p127
      %p129 = pneg %p128
      // Predicated region
      $region9: #{tpu_custom_call.1} parent=5 // pred_check
        _
      $region10: #{tpu_custom_call.1} parent=5 // pred_check_branch
        %131 = sbr.rel (%p128) target = $region12
      $region11: #{tpu_custom_call.1} parent=5 // pred_region
        %s132 = ssub.s32 %s12, 1
        // Predicated region
        $region13: #{tpu_custom_call.1} parent=11 // pred_check
          %p133 = pneg %p50
        $region14: #{tpu_custom_call.1} parent=11 // pred_check_branch
          %135 = sbr.rel (%p133) target = $region16
        $region15: #{tpu_custom_call.1} parent=11 // pred_region
          %s136 = smul.u32 2, %s21
          %s138 = ssub.s32 128, 128
          %139 = vsyncadd [#allocation4], %s138
          %s140 = smul.addr %s136, 64
          %s141 = scalar_lea.hbm %s0, %s140
          %s142 = sshll.u32 [#allocation3], 4
          %s143 = int_to_ptr.vmem [resolvable:$true] %s142
          %148 = dma.hbm_to_vmem [thread:$0]  %s141, 128, %s143, [#allocation4], 64, 64, 4
        $region16: #{tpu_custom_call.1} parent=11 // pred_fallthru
          _
        // Predicated region
        $region17: #{tpu_custom_call.1} parent=11 // pred_check
          %p149 = pneg %p71
        $region18: #{tpu_custom_call.1} parent=11 // pred_check_branch
          %151 = sbr.rel (%p149) target = $region20
        $region19: #{tpu_custom_call.1} parent=11 // pred_region
          %s153 = ssub.s32 2048, 2048
          %154 = vsyncadd [#allocation7], %s153
          %s155 = sshll.u32 [#allocation6], 4
          %s156 = int_to_ptr.vmem [resolvable:$true] %s155
          %161 = dma.hbm_to_vmem [thread:$0]  %s1, 2048, %s156, [#allocation7], 64, 64, 4
        $region20: #{tpu_custom_call.1} parent=11 // pred_fallthru
          _
        // Predicated region
        $region21: #{tpu_custom_call.1} parent=11 // pred_check
          %p162 = pneg %p92
        $region22: #{tpu_custom_call.1} parent=11 // pred_check_branch
          %164 = sbr.rel (%p162) target = $region24
        $region23: #{tpu_custom_call.1} parent=11 // pred_region
          _
        $region24: #{tpu_custom_call.1} parent=11 // pred_fallthru
          _
      $region12: #{tpu_custom_call.1} parent=5 // pred_fallthru
        _
      %p165 = scmp.lt.s32.totalorder %s12, 2
      // Predicated region
      $region25: #{tpu_custom_call.1} parent=5 // pred_check
        %p166 = pneg %p165
      $region26: #{tpu_custom_call.1} parent=5 // pred_check_branch
        %168 = sbr.rel (%p166) target = $region28
      $region27: #{tpu_custom_call.1} parent=5 // pred_region
        _
      $region28: #{tpu_custom_call.1} parent=5 // pred_fallthru
        _
      %p169 = scmp.le.s32.totalorder 1, %s12
      %p170 = scmp.lt.s32.totalorder %s12, 3
      %p171 = pnand %p169, %p170
      %p172 = pneg %p171
      // Predicated region
      $region29: #{tpu_custom_call.1} parent=5 // pred_check
        _
      $region30: #{tpu_custom_call.1} parent=5 // pred_check_branch
        %174 = sbr.rel (%p171) target = $region32
      $region31: #{tpu_custom_call.1} parent=5 // pred_region
        %s175 = ssub.s32 %s12, 1
        // Predicated region
        $region33: #{tpu_custom_call.1} parent=31 // pred_check
          %p176 = pneg %p50
        $region34: #{tpu_custom_call.1} parent=31 // pred_check_branch
          %178 = sbr.rel (%p176) target = $region36
        $region35: #{tpu_custom_call.1} parent=31 // pred_region
          %179 = dma.done [#allocation4], 128
        $region36: #{tpu_custom_call.1} parent=31 // pred_fallthru
          _
        // Predicated region
        $region37: #{tpu_custom_call.1} parent=31 // pred_check
          %p180 = pneg %p71
        $region38: #{tpu_custom_call.1} parent=31 // pred_check_branch
          %182 = sbr.rel (%p180) target = $region40
        $region39: #{tpu_custom_call.1} parent=31 // pred_region
          %183 = dma.done [#allocation7], 2048
        $region40: #{tpu_custom_call.1} parent=31 // pred_fallthru
          _
        %p184 = pneg %p50
        %p185 = pneg %p47
        %p186 = pneg %p71
        %p187 = pneg %p68
        %p188 = pneg %p92
        %p189 = pneg %p89
        %p190 = pneg %p118
        %p191 = pneg %p115
        %s192 = smul.u32 2, %s21
        %s193 = smul.u32 2, %s21
        %p195 = scmp.eq.s32.totalorder %s22, 0
        // Predicated region
        $region41: #{tpu_custom_call.1} parent=31 // pred_check
          %p196 = pneg %p195
        $region42: #{tpu_custom_call.1} parent=31 // pred_check_branch
          %198 = sbr.rel (%p196) target = $region44
        $region43: #{tpu_custom_call.1} parent=31 // pred_region
          %v199 = vld [vmem:[#allocation3] sm:$0xf]
          %v200 = vld [vmem:[#allocation3 + $0x4] sm:$0xf]
          %201 = vst [vmem:[#allocation2] sm:$0xf] %v199
          %202 = vst [vmem:[#allocation2 + $0x4] sm:$0xf] %v200
        $region44: #{tpu_custom_call.1} parent=31 // pred_fallthru
          _
        %s203 = smul.u32 %s22, 16
        %s204 = smul.addr %s203, 4
        %s205 = scalar_lea.vmem [#allocation6], %s204
        %v206 = vld [vmem:[%s205] sm:$0xf]
        %v207 = vld [vmem:[%s205 + $0x4] sm:$0xf]
        %v208 = vld [vmem:[%s205 + $0x8] sm:$0xf]
        %v209 = vld [vmem:[%s205 + $0xc] sm:$0xf]
        %v210 = vld [vmem:[%s205 + $0x10] sm:$0xf]
        %v211 = vld [vmem:[%s205 + $0x14] sm:$0xf]
        %v212 = vld [vmem:[%s205 + $0x18] sm:$0xf]
        %v213 = vld [vmem:[%s205 + $0x1c] sm:$0xf]
        %v214 = vld [vmem:[%s205 + $0x20] sm:$0xf]
        %v215 = vld [vmem:[%s205 + $0x24] sm:$0xf]
        %v216 = vld [vmem:[%s205 + $0x28] sm:$0xf]
        %v217 = vld [vmem:[%s205 + $0x2c] sm:$0xf]
        %v218 = vld [vmem:[%s205 + $0x30] sm:$0xf]
        %v219 = vld [vmem:[%s205 + $0x34] sm:$0xf]
        %v220 = vld [vmem:[%s205 + $0x38] sm:$0xf]
        %v221 = vld [vmem:[%s205 + $0x3c] sm:$0xf]
        %s222 = scalar_lea.vmem %s2, %s22
        %v223 = vld [vmem:[%s222] sm:$0x1]
        %v224 = vld [vmem:[#allocation2] sm:$0xf]
        %v225 = vld [vmem:[#allocation2 + $0x4] sm:$0xf]
        %v227 = vlaneseq
        %v228 = vshrl.u32 %v227, 7
        %v229 = vsub.s32 0, %v228
        %v230 = vrot.slane %v223, %v229
        %v234 = vunpack.c.l.b16 %v224
        %v235 = vunpack.c.l.b16 %v225
        %v236 = vpack.c.b16 %v235, %v234
        %v254 = vunpack.c.l.b16 %v206
        %v255 = vunpack.c.l.b16 %v207
        %v256 = vunpack.c.l.b16 %v208
        %v257 = vunpack.c.l.b16 %v209
        %v258 = vunpack.c.l.b16 %v210
        %v259 = vunpack.c.l.b16 %v211
        %v260 = vunpack.c.l.b16 %v212
        %v261 = vunpack.c.l.b16 %v213
        %v262 = vunpack.c.l.b16 %v214
        %v263 = vunpack.c.l.b16 %v215
        %v264 = vunpack.c.l.b16 %v216
        %v265 = vunpack.c.l.b16 %v217
        %v266 = vunpack.c.l.b16 %v218
        %v267 = vunpack.c.l.b16 %v219
        %v268 = vunpack.c.l.b16 %v220
        %v269 = vunpack.c.l.b16 %v221
        %v270 = vpack.c.b16 %v255, %v254
        %v271 = vpack.c.b16 %v257, %v256
        %v272 = vpack.c.b16 %v259, %v258
        %v273 = vpack.c.b16 %v261, %v260
        %v274 = vpack.c.b16 %v263, %v262
        %v275 = vpack.c.b16 %v265, %v264
        %v276 = vpack.c.b16 %v267, %v266
        %v277 = vpack.c.b16 %v269, %v268
        %286 = vmatprep.subr.bf16.mxu0 0
        %287 = vmatpush1.bf16.msra.mxu0 %v277
        %288 = vmatprep.subr.bf16.mxu0 0
        %289 = vmatpush1.bf16.msra.mxu0 %v276
        %290 = vmatprep.subr.bf16.mxu0 0
        %291 = vmatpush1.bf16.msra.mxu0 %v275
        %292 = vmatprep.subr.bf16.mxu0 0
        %293 = vmatpush1.bf16.msra.mxu0 %v274
        %294 = vmatprep.subr.bf16.mxu0 0
        %295 = vmatpush1.bf16.msra.mxu0 %v273
        %296 = vmatprep.subr.bf16.mxu0 0
        %297 = vmatpush1.bf16.msra.mxu0 %v272
        %298 = vmatprep.subr.bf16.mxu0 0
        %299 = vmatpush1.bf16.msra.mxu0 %v271
        %300 = vmatprep.subr.bf16.mxu0 0
        %301 = vmatpush1.bf16.msra.mxu0 %v270
        %302 = vmatprep.subr.bf16.mxu0 0
        %303 = vmatpush2.bf16.msra.mxu0 0
        %304 = vmatprep.subr.bf16.mxu0 0
        %305 = vmatpush2.bf16.msra.mxu0 0
        %306 = vmatprep.subr.bf16.mxu0 0
        %307 = vmatpush2.bf16.msra.mxu0 0
        %308 = vmatprep.subr.bf16.mxu0 0
        %309 = vmatpush2.bf16.msra.mxu0 0
        %310 = vmatprep.subr.bf16.mxu0 0
        %311 = vmatpush2.bf16.msra.mxu0 0
        %312 = vmatprep.subr.bf16.mxu0 0
        %313 = vmatpush2.bf16.msra.mxu0 0
        %314 = vmatprep.subr.bf16.mxu0 0
        %315 = vmatpush2.bf16.msra.mxu0 0
        %316 = vmatprep.subr.bf16.mxu0 0
        %317 = vmatpush2.bf16.msra.mxu0 0
        %318 = vmatprep.mubr.bf16.mxu0 0
        %319 = vmatmul.mubr.bf16.gmra.mxu0 %v236
        %v320 = vpop.f32.mrf.mxu0
        %v321 = vadd.f32 %v230, %v320
        %v322 = vpop.f32.mrf.mxu0
        %v323 = vpop.f32.mrf.mxu0
        %v324 = vadd.f32 %v230, %v323
        %v325 = vpop.f32.mrf.mxu0
        %326 = vdwg.mxu0
        %v327 = vmax.f32 %v321, 0.0
        %v328 = vmax.f32 %v324, 0.0
        %v329 = vpack.c.bf16 %v328, %v327
        %v331 = vunpack.c.l.b16 %v329
        %v332 = vunpack.c.h.b16 %v329
        %v333 = vpack.c.b16 %v331, %v331
        %v334 = vpack.c.b16 %v332, %v332
        %337 = vst [vmem:[#allocation2] sm:$0xf] %v333
        %338 = vst [vmem:[#allocation2 + $0x4] sm:$0xf] %v334
        %p339 = scmp.eq.s32.totalorder %s22, 1
        // Predicated region
        $region45: #{tpu_custom_call.1} parent=31 // pred_check
          %p340 = pneg %p339
        $region46: #{tpu_custom_call.1} parent=31 // pred_check_branch
          %342 = sbr.rel (%p340) target = $region48
        $region47: #{tpu_custom_call.1} parent=31 // pred_region
          %343 = vst [vmem:[#allocation8] sm:$0xf] %v333
          %344 = vst [vmem:[#allocation8 + $0x4] sm:$0xf] %v334
        $region48: #{tpu_custom_call.1} parent=31 // pred_fallthru
          _
        // Predicated region
        $region49: #{tpu_custom_call.1} parent=31 // pred_check
          %p345 = pneg %p115
        $region50: #{tpu_custom_call.1} parent=31 // pred_check_branch
          %347 = sbr.rel (%p345) target = $region52
        $region51: #{tpu_custom_call.1} parent=31 // pred_region
          %s348 = smul.u32 2, %s21
          %s350 = ssub.s32 128, 128
          %351 = vsyncadd [#allocation5], %s350
          %s352 = smul.addr %s348, 64
          %s353 = scalar_lea.hbm %s3, %s352
          %s354 = sshll.u32 [#allocation8], 4
          %s355 = int_to_ptr.vmem [resolvable:$true] %s354
          %360 = dma.vmem_to_hbm [thread:$0]  %s355, 128, %s353, [#allocation5], 64, 64, 4
        $region52: #{tpu_custom_call.1} parent=31 // pred_fallthru
          _
        // Predicated region
        $region53: #{tpu_custom_call.1} parent=31 // pred_check
          %p361 = pneg %p115
        $region54: #{tpu_custom_call.1} parent=31 // pred_check_branch
          %363 = sbr.rel (%p361) target = $region56
        $region55: #{tpu_custom_call.1} parent=31 // pred_region
          %364 = dma.done [#allocation5], 128
        $region56: #{tpu_custom_call.1} parent=31 // pred_fallthru
          _
      $region32: #{tpu_custom_call.1} parent=5 // pred_fallthru
        _
      %p365 = scmp.le.s32.totalorder 2, %s12
      // Predicated region
      $region57: #{tpu_custom_call.1} parent=5 // pred_check
        %p366 = pneg %p365
      $region58: #{tpu_custom_call.1} parent=5 // pred_check_branch
        %368 = sbr.rel (%p366) target = $region60
      $region59: #{tpu_custom_call.1} parent=5 // pred_region
        %s369 = ssub.s32 %s12, 2
      $region60: #{tpu_custom_call.1} parent=5 // pred_fallthru
        _
    $region6: #{tpu_custom_call.1} parent=1 // loop_footer
      %s16 = sadd.s32 1, %s12
    $region7: #{tpu_custom_call.1} parent=1 // loop_footer_branch
      %11 = sbr.rel target = $region3
    $region8: #{tpu_custom_call.1} parent=1 // loop_exit
      _
    %370 = vsyncpa [#allocation4], 1
    %s371 = scalar_lea.sflag [#allocation4], 1
    %372 = vsyncpa %s371, 1
    %373 = vsyncpa [#allocation7], 1
    %374 = vsyncpa [#allocation5], 1
    %s375 = scalar_lea.sflag [#allocation5], 1
    %376 = vsyncpa %s375, 1

</llo_original>
